<compile_context>
chip_gen: v6e
topology: v6e:2x2x1
jax: 0.10.0
libtpu: 0.0.40
codegen_flags: <defaults>
</compile_context>

<pallas_src>
import jax
import jax.numpy as jnp
from jax.experimental import pallas as pl
from jax.experimental.pallas import tpu as pltpu

BN_EPS = 1e-5


def conv_bn_relu_kernel(w_ref, x_ref, gamma_ref, beta_ref, o_ref):
    # w_ref: [Cout, K]   x_ref: [K, M]   gamma/beta: [Cout, 1]   o_ref: [Cout, M]
    acc = jnp.dot(w_ref[...], x_ref[...],
                  preferred_element_type=jnp.float32)            # [Cout, M] f32
    m = acc.shape[1]
    inv_m = 1.0 / m                                              # static, folded at trace

    # BatchNorm2d (training-mode): per-channel batch mean / biased variance,
    # computed in a single pass over acc (XLU cross-lane reduces).
    mean = jnp.sum(acc, axis=1, keepdims=True) * inv_m           # [Cout, 1]
    mean_sq = jnp.sum(acc * acc, axis=1, keepdims=True) * inv_m  # [Cout, 1]
    var = mean_sq - mean * mean
    scale = gamma_ref[...] * jax.lax.rsqrt(var + BN_EPS)         # EUP rsqrt
    shift = beta_ref[...] - mean * scale

    # BN affine + ReLU (residual=False)
    o_ref[...] = jnp.maximum(acc * scale + shift, 0.0)


def conv2d_bn_relu(x_nchw, weight, bias, gamma, beta, *, stride=1, padding=3):
    """Forward pass of the PyTorch `Conv2d` module (conv + BN + ReLU, residual=False)."""
    del bias  # per-channel conv bias is exactly cancelled by training-mode BN
    assert stride == 1  # TODO(synk): strided conv not needed for this instantiation
    n, cin, h, w = x_nchw.shape
    cout, _, kh, kw = weight.shape
    hout = h + 2 * padding - kh + 1
    wout = w + 2 * padding - kw + 1
    m = n * hout * wout
    k = kh * kw * cin
    k_pad = ((k + 127) // 128) * 128  # 735 -> 768 (zero pad: contributes 0 to dot)

    # ---- wrapper-side layout glue (pure XLA, bf16 throughout) ----
    # Channels-first layout so the transposed im2col X^T[K, M] is built directly:
    # no [M, K] f32 intermediate, no big transpose.
    x_cf = jnp.transpose(x_nchw, (1, 0, 2, 3)).astype(jnp.bfloat16)      # [Cin, N, H, W]
    x_p = jnp.pad(x_cf, ((0, 0), (0, 0),
                         (padding, padding), (padding, padding)))        # spatial pad
    # taps ordered (kh, kw); each tap -> [Cin, M] with M ordered (n, hout, wout)
    taps = [x_p[:, :, i:i + hout, j:j + wout].reshape(cin, m)
            for i in range(kh) for j in range(kw)]
    x_t = jnp.concatenate(taps, axis=0)                                  # [K, M], K=(kh,kw,cin)
    x_t = jnp.pad(x_t, ((0, k_pad - k), (0, 0)))                         # zero rows: dot-neutral

    # PyTorch OIHW -> [Cout, K] with matching (kh, kw, cin) K ordering
    w_t = jnp.transpose(weight, (0, 2, 3, 1)).reshape(cout, k).astype(jnp.bfloat16)
    w_t = jnp.pad(w_t, ((0, 0), (0, k_pad - k)))

    cost = pl.CostEstimate(
        flops=2 * cout * k_pad * m + 6 * cout * m,
        transcendentals=cout,
        bytes_accessed=(w_t.size + x_t.size) * 2 + cout * m * 4,
    )

    out_t = pl.pallas_call(
        conv_bn_relu_kernel,
        out_shape=jax.ShapeDtypeStruct((cout, m), jnp.float32),
        in_specs=[pl.BlockSpec(memory_space=pltpu.MemorySpace.VMEM)] * 4,
        out_specs=pl.BlockSpec(memory_space=pltpu.MemorySpace.VMEM),
        cost_estimate=cost,
    )(w_t, x_t,
      gamma.reshape(cout, 1).astype(jnp.float32),
      beta.reshape(cout, 1).astype(jnp.float32))

    # [Cout, M] -> [Cout, N, Hout, Wout] -> NCHW
    return jnp.transpose(out_t.reshape(cout, n, hout, wout), (1, 0, 2, 3))


def _reference(x_nchw, weight, bias, gamma, beta, *, padding=3):
    out = jax.lax.conv_general_dilated(
        x_nchw, weight, window_strides=(1, 1),
        padding=[(padding, padding), (padding, padding)],
        dimension_numbers=("NCHW", "OIHW", "NCHW"))
    out = out + bias[None, :, None, None]
    mean = jnp.mean(out, axis=(0, 2, 3), keepdims=True)
    var = jnp.mean((out - mean) ** 2, axis=(0, 2, 3), keepdims=True)
    out = (out - mean) * jax.lax.rsqrt(var + BN_EPS)
    out = out * gamma[None, :, None, None] + beta[None, :, None, None]
    return jnp.maximum(out, 0.0)


if __name__ == "__main__":
    key = jax.random.PRNGKey(0)
    k_x, k_w, k_b = jax.random.split(key, 3)

    N, CIN, H, W = 2, 15, 16, 16
    COUT, KH, KW = 32, 7, 7

    x = jax.random.normal(k_x, (N, CIN, H, W), jnp.float32)

    # Deterministic parameter init (PyTorch-style fan-in uniform for the conv,
    # BatchNorm2d default gamma=1 / beta=0).
    fan_in = CIN * KH * KW
    bound = 1.0 / (fan_in ** 0.5)
    weight = jax.random.uniform(k_w, (COUT, CIN, KH, KW), jnp.float32, -bound, bound)
    bias = jax.random.uniform(k_b, (COUT,), jnp.float32, -bound, bound)
    gamma = jnp.ones((COUT,), jnp.float32)
    beta = jnp.zeros((COUT,), jnp.float32)

    out = conv2d_bn_relu(x, weight, bias, gamma, beta, stride=1, padding=3)
    out = jax.block_until_ready(out)

    assert out.shape == (N, COUT, H, W)
    ref = _reference(x, weight, bias, gamma, beta, padding=3)
    err = float(jnp.max(jnp.abs(out - ref)))
    assert jnp.allclose(out, ref, atol=5e-2, rtol=5e-2), err
    print("KERNEL_OK")
</pallas_src>

<mosaic_0001>
module attributes {stable_mosaic.version = 11 : i64} {
  func.func @conv_bn_relu_kernel(%arg0: memref<32x768xbf16, #tpu.memory_space<vmem>>, %arg1: memref<768x512xbf16, #tpu.memory_space<vmem>>, %arg2: memref<32x1xf32, #tpu.memory_space<vmem>>, %arg3: memref<32x1xf32, #tpu.memory_space<vmem>>, %arg4: memref<32x512xf32, #tpu.memory_space<vmem>>) attributes {dimension_semantics = [], scalar_prefetch = 0 : i64, scratch_operands = 0 : i64, tpu.core_type = #tpu.core_type<tc>} {
    %c0 = arith.constant 0 : index
    %c0_0 = arith.constant 0 : index
    %0 = vector.load %arg0[%c0, %c0_0] : memref<32x768xbf16, #tpu.memory_space<vmem>>, vector<32x768xbf16>
    %c0_1 = arith.constant 0 : index
    %c0_2 = arith.constant 0 : index
    %1 = vector.load %arg1[%c0_1, %c0_2] : memref<768x512xbf16, #tpu.memory_space<vmem>>, vector<768x512xbf16>
    %cst = arith.constant dense<0.000000e+00> : vector<32x512xf32>
    %2 = tpu.matmul %0, %1, %cst {dimension_numbers = #tpu.dot_dimension_numbers<[1], [0], [0], [1], [0, 0, 1, 1], [], []>} : vector<32x768xbf16>, vector<768x512xbf16>, vector<32x512xf32> -> vector<32x512xf32>
    %cst_3 = arith.constant dense<0.000000e+00> : vector<32xf32>
    %3 = vector.multi_reduction <add>, %2, %cst_3 [1] : vector<32x512xf32> to vector<32xf32>
    %4 = vector.shape_cast %3 : vector<32xf32> to vector<32x1xf32>
    %cst_4 = arith.constant 0.001953125 : f32
    %5 = vector.broadcast %cst_4 : f32 to vector<32x1xf32>
    %6 = arith.mulf %4, %5 : vector<32x1xf32>
    %7 = arith.mulf %2, %2 : vector<32x512xf32>
    %cst_5 = arith.constant dense<0.000000e+00> : vector<32xf32>
    %8 = vector.multi_reduction <add>, %7, %cst_5 [1] : vector<32x512xf32> to vector<32xf32>
    %9 = vector.shape_cast %8 : vector<32xf32> to vector<32x1xf32>
    %cst_6 = arith.constant 0.001953125 : f32
    %10 = vector.broadcast %cst_6 : f32 to vector<32x1xf32>
    %11 = arith.mulf %9, %10 : vector<32x1xf32>
    %12 = arith.mulf %6, %6 : vector<32x1xf32>
    %13 = arith.subf %11, %12 : vector<32x1xf32>
    %c0_7 = arith.constant 0 : index
    %c0_8 = arith.constant 0 : index
    %14 = vector.load %arg2[%c0_7, %c0_8] : memref<32x1xf32, #tpu.memory_space<vmem>>, vector<32x1xf32>
    %cst_9 = arith.constant 9.99999974E-6 : f32
    %15 = vector.broadcast %cst_9 : f32 to vector<32x1xf32>
    %16 = arith.addf %13, %15 : vector<32x1xf32>
    %17 = math.rsqrt %16 : vector<32x1xf32>
    %18 = arith.mulf %14, %17 : vector<32x1xf32>
    %c0_10 = arith.constant 0 : index
    %c0_11 = arith.constant 0 : index
    %19 = vector.load %arg3[%c0_10, %c0_11] : memref<32x1xf32, #tpu.memory_space<vmem>>, vector<32x1xf32>
    %20 = arith.mulf %6, %18 : vector<32x1xf32>
    %21 = arith.subf %19, %20 : vector<32x1xf32>
    %22 = vector.broadcast %18 : vector<32x1xf32> to vector<32x512xf32>
    %23 = arith.mulf %2, %22 : vector<32x512xf32>
    %24 = vector.broadcast %21 : vector<32x1xf32> to vector<32x512xf32>
    %25 = arith.addf %23, %24 : vector<32x512xf32>
    %cst_12 = arith.constant 0.000000e+00 : f32
    %26 = vector.broadcast %cst_12 : f32 to vector<32x512xf32>
    %27 = arith.maximumf %25, %26 : vector<32x512xf32>
    %c0_13 = arith.constant 0 : index
    %c0_14 = arith.constant 0 : index
    %28 = vector.load %arg4[%c0_13, %c0_14] : memref<32x512xf32, #tpu.memory_space<vmem>>, vector<32x512xf32>
    tpu.vector_store %arg4[%c0_13, %c0_14], %27 {strides = array<i32>} : memref<32x512xf32, #tpu.memory_space<vmem>>, vector<32x512xf32>,
    return
  }
}

</mosaic_0001>

<llo_original>
// kernel: tpu_custom_call.1
$region0: #{tpu_custom_call.1}
  #allocation0 [shape = 'u32[]', space=smem, size = 0x4, offset = 0x4, fixed_abs, tag = 'smem constant byte address 0x4 - core index']
  #allocation1 [shape = 'u32[144,128]{1,0:T(1,128)}', space=vmem, size = 0x12000, scoped, tag = 'internal scratch']
  %s0 = inlined_call_operand.hbm [shape: bf16[32,768], index: 0, kind: input, shape index: {}]
  %s1 = inlined_call_operand.hbm [shape: bf16[768,512], index: 1, kind: input, shape index: {}]
  %s2 = inlined_call_operand.vmem [shape: f32[32,1], index: 2, kind: input, shape index: {}]
  %s3 = inlined_call_operand.vmem [shape: f32[32,1], index: 3, kind: input, shape index: {}]
  %s4 = inlined_call_operand.hbm [shape: f32[32,512], index: 4, kind: output, shape index: {}]
  %s5 = sld [smem:[#allocation0]]
  $region34: #{tpu_custom_call.1} parent=0
    _
  %s7 = ssub.s32 1, %s5
  %s8 = scalar_select 0, %s7, %s5
  $region1: #{tpu_custom_call.1} parent=0
    #allocation2 [shape = 'u8[49152]{0}', space=vmem, size = 0xc000, scoped, tag = 'input window, operand 0, single buffered']
    #allocation3 [shape = 's32[1]{0}', space=sflag, size = 0x4, scoped, tag = 'scoped memory for tpu_custom_call.1']
    #allocation4 [shape = 's32[1]{0}', space=sflag, size = 0x4, scoped, tag = 'scoped memory for tpu_custom_call.1']
    #allocation5 [shape = 'u8[786432]{0}', space=vmem, size = 0xc0000, scoped, tag = 'input window, operand 1, single buffered']
    #allocation6 [shape = 's32[1]{0}', space=sflag, size = 0x4, scoped, tag = 'scoped memory for tpu_custom_call.1']
    #allocation7 [shape = 'u8[65536]{0}', space=vmem, size = 0x10000, scoped, tag = 'output window, operand 0, single buffered']
    %9 = vsyncpa [#allocation3], 0
    %10 = vsyncpa [#allocation6], 0
    %11 = vsyncpa [#allocation4], 0
    // Predicated region
    $region2: #{tpu_custom_call.1} parent=1 // pred_check
      _
    $region3: #{tpu_custom_call.1} parent=1 // pred_check_branch
      %13 = sbr.rel (0) target = $region5
    $region4: #{tpu_custom_call.1} parent=1 // pred_region
      %s15 = ssub.s32 1536, 1536
      %16 = vsyncadd [#allocation3], %s15
      %s17 = sshll.u32 [#allocation2], 4
      %s18 = int_to_ptr.vmem [resolvable:$true] %s17
      %23 = dma.hbm_to_vmem [thread:$0]  %s0, 1536, %s18, [#allocation3], 384, 384, 24
    $region5: #{tpu_custom_call.1} parent=1 // pred_fallthru
      _
    // Predicated region
    $region6: #{tpu_custom_call.1} parent=1 // pred_check
      _
    $region7: #{tpu_custom_call.1} parent=1 // pred_check_branch
      %25 = sbr.rel (0) target = $region9
    $region8: #{tpu_custom_call.1} parent=1 // pred_region
      %s27 = ssub.s32 24576, 24576
      %28 = vsyncadd [#allocation6], %s27
      %s29 = sshll.u32 [#allocation5], 4
      %s30 = int_to_ptr.vmem [resolvable:$true] %s29
      %35 = dma.hbm_to_vmem [thread:$0]  %s1, 24576, %s30, [#allocation6], 256, 256, 16
    $region9: #{tpu_custom_call.1} parent=1 // pred_fallthru
      _
    // Predicated region
    $region10: #{tpu_custom_call.1} parent=1 // pred_check
      _
    $region11: #{tpu_custom_call.1} parent=1 // pred_check_branch
      %37 = sbr.rel (0) target = $region13
    $region12: #{tpu_custom_call.1} parent=1 // pred_region
      _
    $region13: #{tpu_custom_call.1} parent=1 // pred_fallthru
      _
    // Predicated region
    $region14: #{tpu_custom_call.1} parent=1 // pred_check
      _
    $region15: #{tpu_custom_call.1} parent=1 // pred_check_branch
      %39 = sbr.rel (0) target = $region17
    $region16: #{tpu_custom_call.1} parent=1 // pred_region
      _
    $region17: #{tpu_custom_call.1} parent=1 // pred_fallthru
      _
    // Predicated region
    $region18: #{tpu_custom_call.1} parent=1 // pred_check
      _
    $region19: #{tpu_custom_call.1} parent=1 // pred_check_branch
      %41 = sbr.rel (0) target = $region21
    $region20: #{tpu_custom_call.1} parent=1 // pred_region
      %42 = dma.done [#allocation3], 1536
    $region21: #{tpu_custom_call.1} parent=1 // pred_fallthru
      _
    // Predicated region
    $region22: #{tpu_custom_call.1} parent=1 // pred_check
      _
    $region23: #{tpu_custom_call.1} parent=1 // pred_check_branch
      %44 = sbr.rel (0) target = $region25
    $region24: #{tpu_custom_call.1} parent=1 // pred_region
      %45 = dma.done [#allocation6], 24576
    $region25: #{tpu_custom_call.1} parent=1 // pred_fallthru
      _
    %v46 = vld [vmem:[#allocation2] sm:$0xff]
    %v47 = vld [vmem:[#allocation2 + $0x8] sm:$0xff]
    %v48 = vld [vmem:[#allocation2 + $0x10] sm:$0xff]
    %v49 = vld [vmem:[#allocation2 + $0x18] sm:$0xff]
    %v50 = vld [vmem:[#allocation2 + $0x20] sm:$0xff]
    %v51 = vld [vmem:[#allocation2 + $0x28] sm:$0xff]
    %v52 = vld [vmem:[#allocation2 + $0x30] sm:$0xff]
    %v53 = vld [vmem:[#allocation2 + $0x38] sm:$0xff]
    %v54 = vld [vmem:[#allocation2 + $0x40] sm:$0xff]
    %v55 = vld [vmem:[#allocation2 + $0x48] sm:$0xff]
    %v56 = vld [vmem:[#allocation2 + $0x50] sm:$0xff]
    %v57 = vld [vmem:[#allocation2 + $0x58] sm:$0xff]
    %v58 = vld [vmem:[#allocation5] sm:$0xff]
    %v59 = vld [vmem:[#allocation5 + $0x8] sm:$0xff]
    %v60 = vld [vmem:[#allocation5 + $0x10] sm:$0xff]
    %v61 = vld [vmem:[#allocation5 + $0x18] sm:$0xff]
    %v62 = vld [vmem:[#allocation5 + $0x20] sm:$0xff]
    %v63 = vld [vmem:[#allocation5 + $0x28] sm:$0xff]
    %v64 = vld [vmem:[#allocation5 + $0x30] sm:$0xff]
    %v65 = vld [vmem:[#allocation5 + $0x38] sm:$0xff]
    %v66 = vld [vmem:[#allocation5 + $0x40] sm:$0xff]
    %v67 = vld [vmem:[#allocation5 + $0x48] sm:$0xff]
    %v68 = vld [vmem:[#allocation5 + $0x50] sm:$0xff]
    %v69 = vld [vmem:[#allocation5 + $0x58] sm:$0xff]
    %v70 = vld [vmem:[#allocation5 + $0x60] sm:$0xff]
    %v71 = vld [vmem:[#allocation5 + $0x68] sm:$0xff]
    %v72 = vld [vmem:[#allocation5 + $0x70] sm:$0xff]
    %v73 = vld [vmem:[#allocation5 + $0x78] sm:$0xff]
    %v74 = vld [vmem:[#allocation5 + $0x80] sm:$0xff]
    %v75 = vld [vmem:[#allocation5 + $0x88] sm:$0xff]
    %v76 = vld [vmem:[#allocation5 + $0x90] sm:$0xff]
    %v77 = vld [vmem:[#allocation5 + $0x98] sm:$0xff]
    %v78 = vld [vmem:[#allocation5 + $0xa0] sm:$0xff]
    %v79 = vld [vmem:[#allocation5 + $0xa8] sm:$0xff]
    %v80 = vld [vmem:[#allocation5 + $0xb0] sm:$0xff]
    %v81 = vld [vmem:[#allocation5 + $0xb8] sm:$0xff]
    %v82 = vld [vmem:[#allocation5 + $0xc0] sm:$0xff]
    %v83 = vld [vmem:[#allocation5 + $0xc8] sm:$0xff]
    %v84 = vld [vmem:[#allocation5 + $0xd0] sm:$0xff]
    %v85 = vld [vmem:[#allocation5 + $0xd8] sm:$0xff]
    %v86 = vld [vmem:[#allocation5 + $0xe0] sm:$0xff]
    %v87 = vld [vmem:[#allocation5 + $0xe8] sm:$0xff]
    %v88 = vld [vmem:[#allocation5 + $0xf0] sm:$0xff]
    %v89 = vld [vmem:[#allocation5 + $0xf8] sm:$0xff]
    %v90 = vld [vmem:[#allocation5 + $0x100] sm:$0xff]
    %v91 = vld [vmem:[#allocation5 + $0x108] sm:$0xff]
    %v92 = vld [vmem:[#allocation5 + $0x110] sm:$0xff]
    %v93 = vld [vmem:[#allocation5 + $0x118] sm:$0xff]
    %v94 = vld [vmem:[#allocation5 + $0x120] sm:$0xff]
    %v95 = vld [vmem:[#allocation5 + $0x128] sm:$0xff]
    %v96 = vld [vmem:[#allocation5 + $0x130] sm:$0xff]
    %v97 = vld [vmem:[#allocation5 + $0x138] sm:$0xff]
    %v98 = vld [vmem:[#allocation5 + $0x140] sm:$0xff]
    %v99 = vld [vmem:[#allocation5 + $0x148] sm:$0xff]
    %v100 = vld [vmem:[#allocation5 + $0x150] sm:$0xff]
    %v101 = vld [vmem:[#allocation5 + $0x158] sm:$0xff]
    %v102 = vld [vmem:[#allocation5 + $0x160] sm:$0xff]
    %v103 = vld [vmem:[#allocation5 + $0x168] sm:$0xff]
    %v104 = vld [vmem:[#allocation5 + $0x170] sm:$0xff]
    %v105 = vld [vmem:[#allocation5 + $0x178] sm:$0xff]
    %v106 = vld [vmem:[#allocation5 + $0x180] sm:$0xff]
    %v107 = vld [vmem:[#allocation5 + $0x188] sm:$0xff]
    %v108 = vld [vmem:[#allocation5 + $0x190] sm:$0xff]
    %v109 = vld [vmem:[#allocation5 + $0x198] sm:$0xff]
    %v110 = vld [vmem:[#allocation5 + $0x1a0] sm:$0xff]
    %v111 = vld [vmem:[#allocation5 + $0x1a8] sm:$0xff]
    %v112 = vld [vmem:[#allocation5 + $0x1b0] sm:$0xff]
    %v113 = vld [vmem:[#allocation5 + $0x1b8] sm:$0xff]
    %v114 = vld [vmem:[#allocation5 + $0x1c0] sm:$0xff]
    %v115 = vld [vmem:[#allocation5 + $0x1c8] sm:$0xff]
    %v116 = vld [vmem:[#allocation5 + $0x1d0] sm:$0xff]
    %v117 = vld [vmem:[#allocation5 + $0x1d8] sm:$0xff]
    %v118 = vld [vmem:[#allocation5 + $0x1e0] sm:$0xff]
    %v119 = vld [vmem:[#allocation5 + $0x1e8] sm:$0xff]
    %v120 = vld [vmem:[#allocation5 + $0x1f0] sm:$0xff]
    %v121 = vld [vmem:[#allocation5 + $0x1f8] sm:$0xff]
    %v122 = vld [vmem:[#allocation5 + $0x200] sm:$0xff]
    %v123 = vld [vmem:[#allocation5 + $0x208] sm:$0xff]
    %v124 = vld [vmem:[#allocation5 + $0x210] sm:$0xff]
    %v125 = vld [vmem:[#allocation5 + $0x218] sm:$0xff]
    %v126 = vld [vmem:[#allocation5 + $0x220] sm:$0xff]
    %v127 = vld [vmem:[#allocation5 + $0x228] sm:$0xff]
    %v128 = vld [vmem:[#allocation5 + $0x230] sm:$0xff]
    %v129 = vld [vmem:[#allocation5 + $0x238] sm:$0xff]
    %v130 = vld [vmem:[#allocation5 + $0x240] sm:$0xff]
    %v131 = vld [vmem:[#allocation5 + $0x248] sm:$0xff]
    %v132 = vld [vmem:[#allocation5 + $0x250] sm:$0xff]
    %v133 = vld [vmem:[#allocation5 + $0x258] sm:$0xff]
    %v134 = vld [vmem:[#allocation5 + $0x260] sm:$0xff]
    %v135 = vld [vmem:[#allocation5 + $0x268] sm:$0xff]
    %v136 = vld [vmem:[#allocation5 + $0x270] sm:$0xff]
    %v137 = vld [vmem:[#allocation5 + $0x278] sm:$0xff]
    %v138 = vld [vmem:[#allocation5 + $0x280] sm:$0xff]
    %v139 = vld [vmem:[#allocation5 + $0x288] sm:$0xff]
    %v140 = vld [vmem:[#allocation5 + $0x290] sm:$0xff]
    %v141 = vld [vmem:[#allocation5 + $0x298] sm:$0xff]
    %v142 = vld [vmem:[#allocation5 + $0x2a0] sm:$0xff]
    %v143 = vld [vmem:[#allocation5 + $0x2a8] sm:$0xff]
    %v144 = vld [vmem:[#allocation5 + $0x2b0] sm:$0xff]
    %v145 = vld [vmem:[#allocation5 + $0x2b8] sm:$0xff]
    %v146 = vld [vmem:[#allocation5 + $0x2c0] sm:$0xff]
    %v147 = vld [vmem:[#allocation5 + $0x2c8] sm:$0xff]
    %v148 = vld [vmem:[#allocation5 + $0x2d0] sm:$0xff]
    %v149 = vld [vmem:[#allocation5 + $0x2d8] sm:$0xff]
    %v150 = vld [vmem:[#allocation5 + $0x2e0] sm:$0xff]
    %v151 = vld [vmem:[#allocation5 + $0x2e8] sm:$0xff]
    %v152 = vld [vmem:[#allocation5 + $0x2f0] sm:$0xff]
    %v153 = vld [vmem:[#allocation5 + $0x2f8] sm:$0xff]
    %v154 = vld [vmem:[#allocation5 + $0x300] sm:$0xff]
    %v155 = vld [vmem:[#allocation5 + $0x308] sm:$0xff]
    %v156 = vld [vmem:[#allocation5 + $0x310] sm:$0xff]
    %v157 = vld [vmem:[#allocation5 + $0x318] sm:$0xff]
    %v158 = vld [vmem:[#allocation5 + $0x320] sm:$0xff]
    %v159 = vld [vmem:[#allocation5 + $0x328] sm:$0xff]
    %v160 = vld [vmem:[#allocation5 + $0x330] sm:$0xff]
    %v161 = vld [vmem:[#allocation5 + $0x338] sm:$0xff]
    %v162 = vld [vmem:[#allocation5 + $0x340] sm:$0xff]
    %v163 = vld [vmem:[#allocation5 + $0x348] sm:$0xff]
    %v164 = vld [vmem:[#allocation5 + $0x350] sm:$0xff]
    %v165 = vld [vmem:[#allocation5 + $0x358] sm:$0xff]
    %v166 = vld [vmem:[#allocation5 + $0x360] sm:$0xff]
    %v167 = vld [vmem:[#allocation5 + $0x368] sm:$0xff]
    %v168 = vld [vmem:[#allocation5 + $0x370] sm:$0xff]
    %v169 = vld [vmem:[#allocation5 + $0x378] sm:$0xff]
    %v170 = vld [vmem:[#allocation5 + $0x380] sm:$0xff]
    %v171 = vld [vmem:[#allocation5 + $0x388] sm:$0xff]
    %v172 = vld [vmem:[#allocation5 + $0x390] sm:$0xff]
    %v173 = vld [vmem:[#allocation5 + $0x398] sm:$0xff]
    %v174 = vld [vmem:[#allocation5 + $0x3a0] sm:$0xff]
    %v175 = vld [vmem:[#allocation5 + $0x3a8] sm:$0xff]
    %v176 = vld [vmem:[#allocation5 + $0x3b0] sm:$0xff]
    %v177 = vld [vmem:[#allocation5 + $0x3b8] sm:$0xff]
    %v178 = vld [vmem:[#allocation5 + $0x3c0] sm:$0xff]
    %v179 = vld [vmem:[#allocation5 + $0x3c8] sm:$0xff]
    %v180 = vld [vmem:[#allocation5 + $0x3d0] sm:$0xff]
    %v181 = vld [vmem:[#allocation5 + $0x3d8] sm:$0xff]
    %v182 = vld [vmem:[#allocation5 + $0x3e0] sm:$0xff]
    %v183 = vld [vmem:[#allocation5 + $0x3e8] sm:$0xff]
    %v184 = vld [vmem:[#allocation5 + $0x3f0] sm:$0xff]
    %v185 = vld [vmem:[#allocation5 + $0x3f8] sm:$0xff]
    %v186 = vld [vmem:[#allocation5 + $0x400] sm:$0xff]
    %v187 = vld [vmem:[#allocation5 + $0x408] sm:$0xff]
    %v188 = vld [vmem:[#allocation5 + $0x410] sm:$0xff]
    %v189 = vld [vmem:[#allocation5 + $0x418] sm:$0xff]
    %v190 = vld [vmem:[#allocation5 + $0x420] sm:$0xff]
    %v191 = vld [vmem:[#allocation5 + $0x428] sm:$0xff]
    %v192 = vld [vmem:[#allocation5 + $0x430] sm:$0xff]
    %v193 = vld [vmem:[#allocation5 + $0x438] sm:$0xff]
    %v194 = vld [vmem:[#allocation5 + $0x440] sm:$0xff]
    %v195 = vld [vmem:[#allocation5 + $0x448] sm:$0xff]
    %v196 = vld [vmem:[#allocation5 + $0x450] sm:$0xff]
    %v197 = vld [vmem:[#allocation5 + $0x458] sm:$0xff]
    %v198 = vld [vmem:[#allocation5 + $0x460] sm:$0xff]
    %v199 = vld [vmem:[#allocation5 + $0x468] sm:$0xff]
    %v200 = vld [vmem:[#allocation5 + $0x470] sm:$0xff]
    %v201 = vld [vmem:[#allocation5 + $0x478] sm:$0xff]
    %v202 = vld [vmem:[#allocation5 + $0x480] sm:$0xff]
    %v203 = vld [vmem:[#allocation5 + $0x488] sm:$0xff]
    %v204 = vld [vmem:[#allocation5 + $0x490] sm:$0xff]
    %v205 = vld [vmem:[#allocation5 + $0x498] sm:$0xff]
    %v206 = vld [vmem:[#allocation5 + $0x4a0] sm:$0xff]
    %v207 = vld [vmem:[#allocation5 + $0x4a8] sm:$0xff]
    %v208 = vld [vmem:[#allocation5 + $0x4b0] sm:$0xff]
    %v209 = vld [vmem:[#allocation5 + $0x4b8] sm:$0xff]
    %v210 = vld [vmem:[#allocation5 + $0x4c0] sm:$0xff]
    %v211 = vld [vmem:[#allocation5 + $0x4c8] sm:$0xff]
    %v212 = vld [vmem:[#allocation5 + $0x4d0] sm:$0xff]
    %v213 = vld [vmem:[#allocation5 + $0x4d8] sm:$0xff]
    %v214 = vld [vmem:[#allocation5 + $0x4e0] sm:$0xff]
    %v215 = vld [vmem:[#allocation5 + $0x4e8] sm:$0xff]
    %v216 = vld [vmem:[#allocation5 + $0x4f0] sm:$0xff]
    %v217 = vld [vmem:[#allocation5 + $0x4f8] sm:$0xff]
    %v218 = vld [vmem:[#allocation5 + $0x500] sm:$0xff]
    %v219 = vld [vmem:[#allocation5 + $0x508] sm:$0xff]
    %v220 = vld [vmem:[#allocation5 + $0x510] sm:$0xff]
    %v221 = vld [vmem:[#allocation5 + $0x518] sm:$0xff]
    %v222 = vld [vmem:[#allocation5 + $0x520] sm:$0xff]
    %v223 = vld [vmem:[#allocation5 + $0x528] sm:$0xff]
    %v224 = vld [vmem:[#allocation5 + $0x530] sm:$0xff]
    %v225 = vld [vmem:[#allocation5 + $0x538] sm:$0xff]
    %v226 = vld [vmem:[#allocation5 + $0x540] sm:$0xff]
    %v227 = vld [vmem:[#allocation5 + $0x548] sm:$0xff]
    %v228 = vld [vmem:[#allocation5 + $0x550] sm:$0xff]
    %v229 = vld [vmem:[#allocation5 + $0x558] sm:$0xff]
    %v230 = vld [vmem:[#allocation5 + $0x560] sm:$0xff]
    %v231 = vld [vmem:[#allocation5 + $0x568] sm:$0xff]
    %v232 = vld [vmem:[#allocation5 + $0x570] sm:$0xff]
    %v233 = vld [vmem:[#allocation5 + $0x578] sm:$0xff]
    %v234 = vld [vmem:[#allocation5 + $0x580] sm:$0xff]
    %v235 = vld [vmem:[#allocation5 + $0x588] sm:$0xff]
    %v236 = vld [vmem:[#allocation5 + $0x590] sm:$0xff]
    %v237 = vld [vmem:[#allocation5 + $0x598] sm:$0xff]
    %v238 = vld [vmem:[#allocation5 + $0x5a0] sm:$0xff]
    %v239 = vld [vmem:[#allocation5 + $0x5a8] sm:$0xff]
    %v240 = vld [vmem:[#allocation5 + $0x5b0] sm:$0xff]
    %v241 = vld [vmem:[#allocation5 + $0x5b8] sm:$0xff]
    %v242 = vld [vmem:[#allocation5 + $0x5c0] sm:$0xff]
    %v243 = vld [vmem:[#allocation5 + $0x5c8] sm:$0xff]
    %v244 = vld [vmem:[#allocation5 + $0x5d0] sm:$0xff]
    %v245 = vld [vmem:[#allocation5 + $0x5d8] sm:$0xff]
    %v246 = vld [vmem:[#allocation5 + $0x5e0] sm:$0xff]
    %v247 = vld [vmem:[#allocation5 + $0x5e8] sm:$0xff]
    %v248 = vld [vmem:[#allocation5 + $0x5f0] sm:$0xff]
    %v249 = vld [vmem:[#allocation5 + $0x5f8] sm:$0xff]
    %v262 = vunpack.c.l.b16 %v46
    %v263 = vunpack.c.h.b16 %v46
    %v264 = vunpack.c.l.b16 %v47
    %v265 = vunpack.c.h.b16 %v47
    %v266 = vunpack.c.l.b16 %v48
    %v267 = vunpack.c.h.b16 %v48
    %v268 = vunpack.c.l.b16 %v49
    %v269 = vunpack.c.h.b16 %v49
    %v270 = vunpack.c.l.b16 %v50
    %v271 = vunpack.c.h.b16 %v50
    %v272 = vunpack.c.l.b16 %v51
    %v273 = vunpack.c.h.b16 %v51
    %v274 = vunpack.c.l.b16 %v52
    %v275 = vunpack.c.h.b16 %v52
    %v276 = vunpack.c.l.b16 %v53
    %v277 = vunpack.c.h.b16 %v53
    %v278 = vunpack.c.l.b16 %v54
    %v279 = vunpack.c.h.b16 %v54
    %v280 = vunpack.c.l.b16 %v55
    %v281 = vunpack.c.h.b16 %v55
    %v282 = vunpack.c.l.b16 %v56
    %v283 = vunpack.c.h.b16 %v56
    %v284 = vunpack.c.l.b16 %v57
    %v285 = vunpack.c.h.b16 %v57
    %v286 = vpack.c.b16 %v268, %v262
    %v287 = vpack.c.b16 %v269, %v263
    %v288 = vpack.c.b16 %v270, %v264
    %v289 = vpack.c.b16 %v271, %v265
    %v290 = vpack.c.b16 %v272, %v266
    %v291 = vpack.c.b16 %v273, %v267
    %v292 = vpack.c.b16 %v280, %v274
    %v293 = vpack.c.b16 %v281, %v275
    %v294 = vpack.c.b16 %v282, %v276
    %v295 = vpack.c.b16 %v283, %v277
    %v296 = vpack.c.b16 %v284, %v278
    %v297 = vpack.c.b16 %v285, %v279
    %v502 = vunpack.c.l.b16 %v58
    %v503 = vunpack.c.h.b16 %v58
    %v504 = vunpack.c.l.b16 %v59
    %v505 = vunpack.c.h.b16 %v59
    %v506 = vunpack.c.l.b16 %v60
    %v507 = vunpack.c.h.b16 %v60
    %v508 = vunpack.c.l.b16 %v61
    %v509 = vunpack.c.h.b16 %v61
    %v510 = vunpack.c.l.b16 %v62
    %v511 = vunpack.c.h.b16 %v62
    %v512 = vunpack.c.l.b16 %v63
    %v513 = vunpack.c.h.b16 %v63
    %v514 = vunpack.c.l.b16 %v64
    %v515 = vunpack.c.h.b16 %v64
    %v516 = vunpack.c.l.b16 %v65
    %v517 = vunpack.c.h.b16 %v65
    %v518 = vunpack.c.l.b16 %v66
    %v519 = vunpack.c.h.b16 %v66
    %v520 = vunpack.c.l.b16 %v67
    %v521 = vunpack.c.h.b16 %v67
    %v522 = vunpack.c.l.b16 %v68
    %v523 = vunpack.c.h.b16 %v68
    %v524 = vunpack.c.l.b16 %v69
    %v525 = vunpack.c.h.b16 %v69
    %v526 = vunpack.c.l.b16 %v70
    %v527 = vunpack.c.h.b16 %v70
    %v528 = vunpack.c.l.b16 %v71
    %v529 = vunpack.c.h.b16 %v71
    %v530 = vunpack.c.l.b16 %v72
    %v531 = vunpack.c.h.b16 %v72
    %v532 = vunpack.c.l.b16 %v73
    %v533 = vunpack.c.h.b16 %v73
    %v534 = vunpack.c.l.b16 %v74
    %v535 = vunpack.c.h.b16 %v74
    %v536 = vunpack.c.l.b16 %v75
    %v537 = vunpack.c.h.b16 %v75
    %v538 = vunpack.c.l.b16 %v76
    %v539 = vunpack.c.h.b16 %v76
    %v540 = vunpack.c.l.b16 %v77
    %v541 = vunpack.c.h.b16 %v77
    %v542 = vunpack.c.l.b16 %v78
    %v543 = vunpack.c.h.b16 %v78
    %v544 = vunpack.c.l.b16 %v79
    %v545 = vunpack.c.h.b16 %v79
    %v546 = vunpack.c.l.b16 %v80
    %v547 = vunpack.c.h.b16 %v80
    %v548 = vunpack.c.l.b16 %v81
    %v549 = vunpack.c.h.b16 %v81
    %v550 = vunpack.c.l.b16 %v82
    %v551 = vunpack.c.h.b16 %v82
    %v552 = vunpack.c.l.b16 %v83
    %v553 = vunpack.c.h.b16 %v83
    %v554 = vunpack.c.l.b16 %v84
    %v555 = vunpack.c.h.b16 %v84
    %v556 = vunpack.c.l.b16 %v85
    %v557 = vunpack.c.h.b16 %v85
    %v558 = vunpack.c.l.b16 %v86
    %v559 = vunpack.c.h.b16 %v86
    %v560 = vunpack.c.l.b16 %v87
    %v561 = vunpack.c.h.b16 %v87
    %v562 = vunpack.c.l.b16 %v88
    %v563 = vunpack.c.h.b16 %v88
    %v564 = vunpack.c.l.b16 %v89
    %v565 = vunpack.c.h.b16 %v89
    %v566 = vunpack.c.l.b16 %v90
    %v567 = vunpack.c.h.b16 %v90
    %v568 = vunpack.c.l.b16 %v91
    %v569 = vunpack.c.h.b16 %v91
    %v570 = vunpack.c.l.b16 %v92
    %v571 = vunpack.c.h.b16 %v92
    %v572 = vunpack.c.l.b16 %v93
    %v573 = vunpack.c.h.b16 %v93
    %v574 = vunpack.c.l.b16 %v94
    %v575 = vunpack.c.h.b16 %v94
    %v576 = vunpack.c.l.b16 %v95
    %v577 = vunpack.c.h.b16 %v95
    %v578 = vunpack.c.l.b16 %v96
    %v579 = vunpack.c.h.b16 %v96
    %v580 = vunpack.c.l.b16 %v97
    %v581 = vunpack.c.h.b16 %v97
    %v582 = vunpack.c.l.b16 %v98
    %v583 = vunpack.c.h.b16 %v98
    %v584 = vunpack.c.l.b16 %v99
    %v585 = vunpack.c.h.b16 %v99
    %v586 = vunpack.c.l.b16 %v100
    %v587 = vunpack.c.h.b16 %v100
    %v588 = vunpack.c.l.b16 %v101
    %v589 = vunpack.c.h.b16 %v101
    %v590 = vunpack.c.l.b16 %v102
    %v591 = vunpack.c.h.b16 %v102
    %v592 = vunpack.c.l.b16 %v103
    %v593 = vunpack.c.h.b16 %v103
    %v594 = vunpack.c.l.b16 %v104
    %v595 = vunpack.c.h.b16 %v104
    %v596 = vunpack.c.l.b16 %v105
    %v597 = vunpack.c.h.b16 %v105
    %v598 = vunpack.c.l.b16 %v106
    %v599 = vunpack.c.h.b16 %v106
    %v600 = vunpack.c.l.b16 %v107
    %v601 = vunpack.c.h.b16 %v107
    %v602 = vunpack.c.l.b16 %v108
    %v603 = vunpack.c.h.b16 %v108
    %v604 = vunpack.c.l.b16 %v109
    %v605 = vunpack.c.h.b16 %v109
    %v606 = vunpack.c.l.b16 %v110
    %v607 = vunpack.c.h.b16 %v110
    %v608 = vunpack.c.l.b16 %v111
    %v609 = vunpack.c.h.b16 %v111
    %v610 = vunpack.c.l.b16 %v112
    %v611 = vunpack.c.h.b16 %v112
    %v612 = vunpack.c.l.b16 %v113
    %v613 = vunpack.c.h.b16 %v113
    %v614 = vunpack.c.l.b16 %v114
    %v615 = vunpack.c.h.b16 %v114
    %v616 = vunpack.c.l.b16 %v115
    %v617 = vunpack.c.h.b16 %v115
    %v618 = vunpack.c.l.b16 %v116
    %v619 = vunpack.c.h.b16 %v116
    %v620 = vunpack.c.l.b16 %v117
    %v621 = vunpack.c.h.b16 %v117
    %v622 = vunpack.c.l.b16 %v118
    %v623 = vunpack.c.h.b16 %v118
    %v624 = vunpack.c.l.b16 %v119
    %v625 = vunpack.c.h.b16 %v119
    %v626 = vunpack.c.l.b16 %v120
    %v627 = vunpack.c.h.b16 %v120
    %v628 = vunpack.c.l.b16 %v121
    %v629 = vunpack.c.h.b16 %v121
    %v630 = vunpack.c.l.b16 %v122
    %v631 = vunpack.c.h.b16 %v122
    %v632 = vunpack.c.l.b16 %v123
    %v633 = vunpack.c.h.b16 %v123
    %v634 = vunpack.c.l.b16 %v124
    %v635 = vunpack.c.h.b16 %v124
    %v636 = vunpack.c.l.b16 %v125
    %v637 = vunpack.c.h.b16 %v125
    %v638 = vunpack.c.l.b16 %v126
    %v639 = vunpack.c.h.b16 %v126
    %v640 = vunpack.c.l.b16 %v127
    %v641 = vunpack.c.h.b16 %v127
    %v642 = vunpack.c.l.b16 %v128
    %v643 = vunpack.c.h.b16 %v128
    %v644 = vunpack.c.l.b16 %v129
    %v645 = vunpack.c.h.b16 %v129
    %v646 = vunpack.c.l.b16 %v130
    %v647 = vunpack.c.h.b16 %v130
    %v648 = vunpack.c.l.b16 %v131
    %v649 = vunpack.c.h.b16 %v131
    %v650 = vunpack.c.l.b16 %v132
    %v651 = vunpack.c.h.b16 %v132
    %v652 = vunpack.c.l.b16 %v133
    %v653 = vunpack.c.h.b16 %v133
    %v654 = vunpack.c.l.b16 %v134
    %v655 = vunpack.c.h.b16 %v134
    %v656 = vunpack.c.l.b16 %v135
    %v657 = vunpack.c.h.b16 %v135
    %v658 = vunpack.c.l.b16 %v136
    %v659 = vunpack.c.h.b16 %v136
    %v660 = vunpack.c.l.b16 %v137
    %v661 = vunpack.c.h.b16 %v137
    %v662 = vunpack.c.l.b16 %v138
    %v663 = vunpack.c.h.b16 %v138
    %v664 = vunpack.c.l.b16 %v139
    %v665 = vunpack.c.h.b16 %v139
    %v666 = vunpack.c.l.b16 %v140
    %v667 = vunpack.c.h.b16 %v140
    %v668 = vunpack.c.l.b16 %v141
    %v669 = vunpack.c.h.b16 %v141
    %v670 = vunpack.c.l.b16 %v142
    %v671 = vunpack.c.h.b16 %v142
    %v672 = vunpack.c.l.b16 %v143
    %v673 = vunpack.c.h.b16 %v143
    %v674 = vunpack.c.l.b16 %v144
    %v675 = vunpack.c.h.b16 %v144
    %v676 = vunpack.c.l.b16 %v145
    %v677 = vunpack.c.h.b16 %v145
    %v678 = vunpack.c.l.b16 %v146
    %v679 = vunpack.c.h.b16 %v146
    %v680 = vunpack.c.l.b16 %v147
    %v681 = vunpack.c.h.b16 %v147
    %v682 = vunpack.c.l.b16 %v148
    %v683 = vunpack.c.h.b16 %v148
    %v684 = vunpack.c.l.b16 %v149
    %v685 = vunpack.c.h.b16 %v149
    %v686 = vunpack.c.l.b16 %v150
    %v687 = vunpack.c.h.b16 %v150
    %v688 = vunpack.c.l.b16 %v151
    %v689 = vunpack.c.h.b16 %v151
    %v690 = vunpack.c.l.b16 %v152
    %v691 = vunpack.c.h.b16 %v152
    %v692 = vunpack.c.l.b16 %v153
    %v693 = vunpack.c.h.b16 %v153
    %v694 = vunpack.c.l.b16 %v154
    %v695 = vunpack.c.h.b16 %v154
    %v696 = vunpack.c.l.b16 %v155
    %v697 = vunpack.c.h.b16 %v155
    %v698 = vunpack.c.l.b16 %v156
    %v699 = vunpack.c.h.b16 %v156
    %v700 = vunpack.c.l.b16 %v157
    %v701 = vunpack.c.h.b16 %v157
    %v702 = vunpack.c.l.b16 %v158
    %v703 = vunpack.c.h.b16 %v158
    %v704 = vunpack.c.l.b16 %v159
    %v705 = vunpack.c.h.b16 %v159
    %v706 = vunpack.c.l.b16 %v160
    %v707 = vunpack.c.h.b16 %v160
    %v708 = vunpack.c.l.b16 %v161
    %v709 = vunpack.c.h.b16 %v161
    %v710 = vunpack.c.l.b16 %v162
    %v711 = vunpack.c.h.b16 %v162
    %v712 = vunpack.c.l.b16 %v163
    %v713 = vunpack.c.h.b16 %v163
    %v714 = vunpack.c.l.b16 %v164
    %v715 = vunpack.c.h.b16 %v164
    %v716 = vunpack.c.l.b16 %v165
    %v717 = vunpack.c.h.b16 %v165
    %v718 = vunpack.c.l.b16 %v166
    %v719 = vunpack.c.h.b16 %v166
    %v720 = vunpack.c.l.b16 %v167
    %v721 = vunpack.c.h.b16 %v167
    %v722 = vunpack.c.l.b16 %v168
    %v723 = vunpack.c.h.b16 %v168
    %v724 = vunpack.c.l.b16 %v169
    %v725 = vunpack.c.h.b16 %v169
    %v726 = vunpack.c.l.b16 %v170
    %v727 = vunpack.c.h.b16 %v170
    %v728 = vunpack.c.l.b16 %v171
    %v729 = vunpack.c.h.b16 %v171
    %v730 = vunpack.c.l.b16 %v172
    %v731 = vunpack.c.h.b16 %v172
    %v732 = vunpack.c.l.b16 %v173
    %v733 = vunpack.c.h.b16 %v173
    %v734 = vunpack.c.l.b16 %v174
    %v735 = vunpack.c.h.b16 %v174
    %v736 = vunpack.c.l.b16 %v175
    %v737 = vunpack.c.h.b16 %v175
    %v738 = vunpack.c.l.b16 %v176
    %v739 = vunpack.c.h.b16 %v176
    %v740 = vunpack.c.l.b16 %v177
    %v741 = vunpack.c.h.b16 %v177
    %v742 = vunpack.c.l.b16 %v178
    %v743 = vunpack.c.h.b16 %v178
    %v744 = vunpack.c.l.b16 %v179
    %v745 = vunpack.c.h.b16 %v179
    %v746 = vunpack.c.l.b16 %v180
    %v747 = vunpack.c.h.b16 %v180
    %v748 = vunpack.c.l.b16 %v181
    %v749 = vunpack.c.h.b16 %v181
    %v750 = vunpack.c.l.b16 %v182
    %v751 = vunpack.c.h.b16 %v182
    %v752 = vunpack.c.l.b16 %v183
    %v753 = vunpack.c.h.b16 %v183
    %v754 = vunpack.c.l.b16 %v184
    %v755 = vunpack.c.h.b16 %v184
    %v756 = vunpack.c.l.b16 %v185
    %v757 = vunpack.c.h.b16 %v185
    %v758 = vunpack.c.l.b16 %v186
    %v759 = vunpack.c.h.b16 %v186
    %v760 = vunpack.c.l.b16 %v187
    %v761 = vunpack.c.h.b16 %v187
    %v762 = vunpack.c.l.b16 %v188
    %v763 = vunpack.c.h.b16 %v188
    %v764 = vunpack.c.l.b16 %v189
    %v765 = vunpack.c.h.b16 %v189
    %v766 = vunpack.c.l.b16 %v190
    %v767 = vunpack.c.h.b16 %v190
    %v768 = vunpack.c.l.b16 %v191
    %v769 = vunpack.c.h.b16 %v191
    %v770 = vunpack.c.l.b16 %v192
    %v771 = vunpack.c.h.b16 %v192
    %v772 = vunpack.c.l.b16 %v193
    %v773 = vunpack.c.h.b16 %v193
    %v774 = vunpack.c.l.b16 %v194
    %v775 = vunpack.c.h.b16 %v194
    %v776 = vunpack.c.l.b16 %v195
    %v777 = vunpack.c.h.b16 %v195
    %v778 = vunpack.c.l.b16 %v196
    %v779 = vunpack.c.h.b16 %v196
    %v780 = vunpack.c.l.b16 %v197
    %v781 = vunpack.c.h.b16 %v197
    %v782 = vunpack.c.l.b16 %v198
    %v783 = vunpack.c.h.b16 %v198
    %v784 = vunpack.c.l.b16 %v199
    %v785 = vunpack.c.h.b16 %v199
    %v786 = vunpack.c.l.b16 %v200
    %v787 = vunpack.c.h.b16 %v200
    %v788 = vunpack.c.l.b16 %v201
    %v789 = vunpack.c.h.b16 %v201
    %v790 = vunpack.c.l.b16 %v202
    %v791 = vunpack.c.h.b16 %v202
    %v792 = vunpack.c.l.b16 %v203
    %v793 = vunpack.c.h.b16 %v203
    %v794 = vunpack.c.l.b16 %v204
    %v795 = vunpack.c.h.b16 %v204
    %v796 = vunpack.c.l.b16 %v205
    %v797 = vunpack.c.h.b16 %v205
    %v798 = vunpack.c.l.b16 %v206
    %v799 = vunpack.c.h.b16 %v206
    %v800 = vunpack.c.l.b16 %v207
    %v801 = vunpack.c.h.b16 %v207
    %v802 = vunpack.c.l.b16 %v208
    %v803 = vunpack.c.h.b16 %v208
    %v804 = vunpack.c.l.b16 %v209
    %v805 = vunpack.c.h.b16 %v209
    %v806 = vunpack.c.l.b16 %v210
    %v807 = vunpack.c.h.b16 %v210
    %v808 = vunpack.c.l.b16 %v211
    %v809 = vunpack.c.h.b16 %v211
    %v810 = vunpack.c.l.b16 %v212
    %v811 = vunpack.c.h.b16 %v212
    %v812 = vunpack.c.l.b16 %v213
    %v813 = vunpack.c.h.b16 %v213
    %v814 = vunpack.c.l.b16 %v214
    %v815 = vunpack.c.h.b16 %v214
    %v816 = vunpack.c.l.b16 %v215
    %v817 = vunpack.c.h.b16 %v215
    %v818 = vunpack.c.l.b16 %v216
    %v819 = vunpack.c.h.b16 %v216
    %v820 = vunpack.c.l.b16 %v217
    %v821 = vunpack.c.h.b16 %v217
    %v822 = vunpack.c.l.b16 %v218
    %v823 = vunpack.c.h.b16 %v218
    %v824 = vunpack.c.l.b16 %v219
    %v825 = vunpack.c.h.b16 %v219
    %v826 = vunpack.c.l.b16 %v220
    %v827 = vunpack.c.h.b16 %v220
    %v828 = vunpack.c.l.b16 %v221
    %v829 = vunpack.c.h.b16 %v221
    %v830 = vunpack.c.l.b16 %v222
    %v831 = vunpack.c.h.b16 %v222
    %v832 = vunpack.c.l.b16 %v223
    %v833 = vunpack.c.h.b16 %v223
    %v834 = vunpack.c.l.b16 %v224
    %v835 = vunpack.c.h.b16 %v224
    %v836 = vunpack.c.l.b16 %v225
    %v837 = vunpack.c.h.b16 %v225
    %v838 = vunpack.c.l.b16 %v226
    %v839 = vunpack.c.h.b16 %v226
    %v840 = vunpack.c.l.b16 %v227
    %v841 = vunpack.c.h.b16 %v227
    %v842 = vunpack.c.l.b16 %v228
    %v843 = vunpack.c.h.b16 %v228
    %v844 = vunpack.c.l.b16 %v229
    %v845 = vunpack.c.h.b16 %v229
    %v846 = vunpack.c.l.b16 %v230
    %v847 = vunpack.c.h.b16 %v230
    %v848 = vunpack.c.l.b16 %v231
    %v849 = vunpack.c.h.b16 %v231
    %v850 = vunpack.c.l.b16 %v232
    %v851 = vunpack.c.h.b16 %v232
    %v852 = vunpack.c.l.b16 %v233
    %v853 = vunpack.c.h.b16 %v233
    %v854 = vunpack.c.l.b16 %v234
    %v855 = vunpack.c.h.b16 %v234
    %v856 = vunpack.c.l.b16 %v235
    %v857 = vunpack.c.h.b16 %v235
    %v858 = vunpack.c.l.b16 %v236
    %v859 = vunpack.c.h.b16 %v236
    %v860 = vunpack.c.l.b16 %v237
    %v861 = vunpack.c.h.b16 %v237
    %v862 = vunpack.c.l.b16 %v238
    %v863 = vunpack.c.h.b16 %v238
    %v864 = vunpack.c.l.b16 %v239
    %v865 = vunpack.c.h.b16 %v239
    %v866 = vunpack.c.l.b16 %v240
    %v867 = vunpack.c.h.b16 %v240
    %v868 = vunpack.c.l.b16 %v241
    %v869 = vunpack.c.h.b16 %v241
    %v870 = vunpack.c.l.b16 %v242
    %v871 = vunpack.c.h.b16 %v242
    %v872 = vunpack.c.l.b16 %v243
    %v873 = vunpack.c.h.b16 %v243
    %v874 = vunpack.c.l.b16 %v244
    %v875 = vunpack.c.h.b16 %v244
    %v876 = vunpack.c.l.b16 %v245
    %v877 = vunpack.c.h.b16 %v245
    %v878 = vunpack.c.l.b16 %v246
    %v879 = vunpack.c.h.b16 %v246
    %v880 = vunpack.c.l.b16 %v247
    %v881 = vunpack.c.h.b16 %v247
    %v882 = vunpack.c.l.b16 %v248
    %v883 = vunpack.c.h.b16 %v248
    %v884 = vunpack.c.l.b16 %v249
    %v885 = vunpack.c.h.b16 %v249
    %v886 = vpack.c.b16 %v506, %v502
    %v887 = vpack.c.b16 %v507, %v503
    %v888 = vpack.c.b16 %v508, %v504
    %v889 = vpack.c.b16 %v509, %v505
    %v890 = vpack.c.b16 %v514, %v510
    %v891 = vpack.c.b16 %v515, %v511
    %v892 = vpack.c.b16 %v516, %v512
    %v893 = vpack.c.b16 %v517, %v513
    %v894 = vpack.c.b16 %v522, %v518
    %v895 = vpack.c.b16 %v523, %v519
    %v896 = vpack.c.b16 %v524, %v520
    %v897 = vpack.c.b16 %v525, %v521
    %v898 = vpack.c.b16 %v530, %v526
    %v899 = vpack.c.b16 %v531, %v527
    %v900 = vpack.c.b16 %v532, %v528
    %v901 = vpack.c.b16 %v533, %v529
    %v902 = vpack.c.b16 %v538, %v534
    %v903 = vpack.c.b16 %v539, %v535
    %v904 = vpack.c.b16 %v540, %v536
    %v905 = vpack.c.b16 %v541, %v537
    %v906 = vpack.c.b16 %v546, %v542
    %v907 = vpack.c.b16 %v547, %v543
    %v908 = vpack.c.b16 %v548, %v544
    %v909 = vpack.c.b16 %v549, %v545
    %v910 = vpack.c.b16 %v554, %v550
    %v911 = vpack.c.b16 %v555, %v551
    %v912 = vpack.c.b16 %v556, %v552
    %v913 = vpack.c.b16 %v557, %v553
    %v914 = vpack.c.b16 %v562, %v558
    %v915 = vpack.c.b16 %v563, %v559
    %v916 = vpack.c.b16 %v564, %v560
    %v917 = vpack.c.b16 %v565, %v561
    %v918 = vpack.c.b16 %v570, %v566
    %v919 = vpack.c.b16 %v571, %v567
    %v920 = vpack.c.b16 %v572, %v568
    %v921 = vpack.c.b16 %v573, %v569
    %v922 = vpack.c.b16 %v578, %v574
    %v923 = vpack.c.b16 %v579, %v575
    %v924 = vpack.c.b16 %v580, %v576
    %v925 = vpack.c.b16 %v581, %v577
    %v926 = vpack.c.b16 %v586, %v582
    %v927 = vpack.c.b16 %v587, %v583
    %v928 = vpack.c.b16 %v588, %v584
    %v929 = vpack.c.b16 %v589, %v585
    %v930 = vpack.c.b16 %v594, %v590
    %v931 = vpack.c.b16 %v595, %v591
    %v932 = vpack.c.b16 %v596, %v592
    %v933 = vpack.c.b16 %v597, %v593
    %v934 = vpack.c.b16 %v602, %v598
    %v935 = vpack.c.b16 %v603, %v599
    %v936 = vpack.c.b16 %v604, %v600
    %v937 = vpack.c.b16 %v605, %v601
    %v938 = vpack.c.b16 %v610, %v606
    %v939 = vpack.c.b16 %v611, %v607
    %v940 = vpack.c.b16 %v612, %v608
    %v941 = vpack.c.b16 %v613, %v609
    %v942 = vpack.c.b16 %v618, %v614
    %v943 = vpack.c.b16 %v619, %v615
    %v944 = vpack.c.b16 %v620, %v616
    %v945 = vpack.c.b16 %v621, %v617
    %v946 = vpack.c.b16 %v626, %v622
    %v947 = vpack.c.b16 %v627, %v623
    %v948 = vpack.c.b16 %v628, %v624
    %v949 = vpack.c.b16 %v629, %v625
    %v950 = vpack.c.b16 %v634, %v630
    %v951 = vpack.c.b16 %v635, %v631
    %v952 = vpack.c.b16 %v636, %v632
    %v953 = vpack.c.b16 %v637, %v633
    %v954 = vpack.c.b16 %v642, %v638
    %v955 = vpack.c.b16 %v643, %v639
    %v956 = vpack.c.b16 %v644, %v640
    %v957 = vpack.c.b16 %v645, %v641
    %v958 = vpack.c.b16 %v650, %v646
    %v959 = vpack.c.b16 %v651, %v647
    %v960 = vpack.c.b16 %v652, %v648
    %v961 = vpack.c.b16 %v653, %v649
    %v962 = vpack.c.b16 %v658, %v654
    %v963 = vpack.c.b16 %v659, %v655
    %v964 = vpack.c.b16 %v660, %v656
    %v965 = vpack.c.b16 %v661, %v657
    %v966 = vpack.c.b16 %v666, %v662
    %v967 = vpack.c.b16 %v667, %v663
    %v968 = vpack.c.b16 %v668, %v664
    %v969 = vpack.c.b16 %v669, %v665
    %v970 = vpack.c.b16 %v674, %v670
    %v971 = vpack.c.b16 %v675, %v671
    %v972 = vpack.c.b16 %v676, %v672
    %v973 = vpack.c.b16 %v677, %v673
    %v974 = vpack.c.b16 %v682, %v678
    %v975 = vpack.c.b16 %v683, %v679
    %v976 = vpack.c.b16 %v684, %v680
    %v977 = vpack.c.b16 %v685, %v681
    %v978 = vpack.c.b16 %v690, %v686
    %v979 = vpack.c.b16 %v691, %v687
    %v980 = vpack.c.b16 %v692, %v688
    %v981 = vpack.c.b16 %v693, %v689
    %v982 = vpack.c.b16 %v698, %v694
    %v983 = vpack.c.b16 %v699, %v695
    %v984 = vpack.c.b16 %v700, %v696
    %v985 = vpack.c.b16 %v701, %v697
    %v986 = vpack.c.b16 %v706, %v702
    %v987 = vpack.c.b16 %v707, %v703
    %v988 = vpack.c.b16 %v708, %v704
    %v989 = vpack.c.b16 %v709, %v705
    %v990 = vpack.c.b16 %v714, %v710
    %v991 = vpack.c.b16 %v715, %v711
    %v992 = vpack.c.b16 %v716, %v712
    %v993 = vpack.c.b16 %v717, %v713
    %v994 = vpack.c.b16 %v722, %v718
    %v995 = vpack.c.b16 %v723, %v719
    %v996 = vpack.c.b16 %v724, %v720
    %v997 = vpack.c.b16 %v725, %v721
    %v998 = vpack.c.b16 %v730, %v726
    %v999 = vpack.c.b16 %v731, %v727
    %v1000 = vpack.c.b16 %v732, %v728
    %v1001 = vpack.c.b16 %v733, %v729
    %v1002 = vpack.c.b16 %v738, %v734
    %v1003 = vpack.c.b16 %v739, %v735
    %v1004 = vpack.c.b16 %v740, %v736
    %v1005 = vpack.c.b16 %v741, %v737
    %v1006 = vpack.c.b16 %v746, %v742
    %v1007 = vpack.c.b16 %v747, %v743
    %v1008 = vpack.c.b16 %v748, %v744
    %v1009 = vpack.c.b16 %v749, %v745
    %v1010 = vpack.c.b16 %v754, %v750
    %v1011 = vpack.c.b16 %v755, %v751
    %v1012 = vpack.c.b16 %v756, %v752
    %v1013 = vpack.c.b16 %v757, %v753
    %v1014 = vpack.c.b16 %v762, %v758
    %v1015 = vpack.c.b16 %v763, %v759
    %v1016 = vpack.c.b16 %v764, %v760
    %v1017 = vpack.c.b16 %v765, %v761
    %v1018 = vpack.c.b16 %v770, %v766
    %v1019 = vpack.c.b16 %v771, %v767
    %v1020 = vpack.c.b16 %v772, %v768
    %v1021 = vpack.c.b16 %v773, %v769
    %v1022 = vpack.c.b16 %v778, %v774
    %v1023 = vpack.c.b16 %v779, %v775
    %v1024 = vpack.c.b16 %v780, %v776
    %v1025 = vpack.c.b16 %v781, %v777
    %v1026 = vpack.c.b16 %v786, %v782
    %v1027 = vpack.c.b16 %v787, %v783
    %v1028 = vpack.c.b16 %v788, %v784
    %v1029 = vpack.c.b16 %v789, %v785
    %v1030 = vpack.c.b16 %v794, %v790
    %v1031 = vpack.c.b16 %v795, %v791
    %v1032 = vpack.c.b16 %v796, %v792
    %v1033 = vpack.c.b16 %v797, %v793
    %v1034 = vpack.c.b16 %v802, %v798
    %v1035 = vpack.c.b16 %v803, %v799
    %v1036 = vpack.c.b16 %v804, %v800
    %v1037 = vpack.c.b16 %v805, %v801
    %v1038 = vpack.c.b16 %v810, %v806
    %v1039 = vpack.c.b16 %v811, %v807
    %v1040 = vpack.c.b16 %v812, %v808
    %v1041 = vpack.c.b16 %v813, %v809
    %v1042 = vpack.c.b16 %v818, %v814
    %v1043 = vpack.c.b16 %v819, %v815
    %v1044 = vpack.c.b16 %v820, %v816
    %v1045 = vpack.c.b16 %v821, %v817
    %v1046 = vpack.c.b16 %v826, %v822
    %v1047 = vpack.c.b16 %v827, %v823
    %v1048 = vpack.c.b16 %v828, %v824
    %v1049 = vpack.c.b16 %v829, %v825
    %v1050 = vpack.c.b16 %v834, %v830
    %v1051 = vpack.c.b16 %v835, %v831
    %v1052 = vpack.c.b16 %v836, %v832
    %v1053 = vpack.c.b16 %v837, %v833
    %v1054 = vpack.c.b16 %v842, %v838
    %v1055 = vpack.c.b16 %v843, %v839
    %v1056 = vpack.c.b16 %v844, %v840
    %v1057 = vpack.c.b16 %v845, %v841
    %v1058 = vpack.c.b16 %v850, %v846
    %v1059 = vpack.c.b16 %v851, %v847
    %v1060 = vpack.c.b16 %v852, %v848
    %v1061 = vpack.c.b16 %v853, %v849
    %v1062 = vpack.c.b16 %v858, %v854
    %v1063 = vpack.c.b16 %v859, %v855
    %v1064 = vpack.c.b16 %v860, %v856
    %v1065 = vpack.c.b16 %v861, %v857
    %v1066 = vpack.c.b16 %v866, %v862
    %v1067 = vpack.c.b16 %v867, %v863
    %v1068 = vpack.c.b16 %v868, %v864
    %v1069 = vpack.c.b16 %v869, %v865
    %v1070 = vpack.c.b16 %v874, %v870
    %v1071 = vpack.c.b16 %v875, %v871
    %v1072 = vpack.c.b16 %v876, %v872
    %v1073 = vpack.c.b16 %v877, %v873
    %v1074 = vpack.c.b16 %v882, %v878
    %v1075 = vpack.c.b16 %v883, %v879
    %v1076 = vpack.c.b16 %v884, %v880
    %v1077 = vpack.c.b16 %v885, %v881
    %1270 = vmatprep.subr.bf16.mxu0 %v915
    %1271 = vmatpush1.bf16.msra.mxu0 %v914
    %1272 = vmatprep.subr.bf16.mxu0 %v911
    %1273 = vmatpush1.bf16.msra.mxu0 %v910
    %1274 = vmatprep.subr.bf16.mxu0 %v907
    %1275 = vmatpush1.bf16.msra.mxu0 %v906
    %1276 = vmatprep.subr.bf16.mxu0 %v903
    %1277 = vmatpush1.bf16.msra.mxu0 %v902
    %1278 = vmatprep.subr.bf16.mxu0 %v899
    %1279 = vmatpush1.bf16.msra.mxu0 %v898
    %1280 = vmatprep.subr.bf16.mxu0 %v895
    %1281 = vmatpush1.bf16.msra.mxu0 %v894
    %1282 = vmatprep.subr.bf16.mxu0 %v891
    %1283 = vmatpush1.bf16.msra.mxu0 %v890
    %1284 = vmatprep.subr.bf16.mxu0 %v887
    %1285 = vmatpush1.bf16.msra.mxu0 %v886
    %1286 = vmatprep.subr.bf16.mxu0 %v947
    %1287 = vmatpush2.bf16.msra.mxu0 %v946
    %1288 = vmatprep.subr.bf16.mxu0 %v943
    %1289 = vmatpush2.bf16.msra.mxu0 %v942
    %1290 = vmatprep.subr.bf16.mxu0 %v939
    %1291 = vmatpush2.bf16.msra.mxu0 %v938
    %1292 = vmatprep.subr.bf16.mxu0 %v935
    %1293 = vmatpush2.bf16.msra.mxu0 %v934
    %1294 = vmatprep.subr.bf16.mxu0 %v931
    %1295 = vmatpush2.bf16.msra.mxu0 %v930
    %1296 = vmatprep.subr.bf16.mxu0 %v927
    %1297 = vmatpush2.bf16.msra.mxu0 %v926
    %1298 = vmatprep.subr.bf16.mxu0 %v923
    %1299 = vmatpush2.bf16.msra.mxu0 %v922
    %1300 = vmatprep.subr.bf16.mxu0 %v919
    %1301 = vmatpush2.bf16.msra.mxu0 %v918
    %1302 = vmatprep.mubr.bf16.mxu0 %v287
    %1303 = vmatmul.mubr.bf16.gmra.mxu0 %v286
    %v1304 = vpop.f32.mrf.mxu0
    %v1305 = vadd.f32 0.0, %v1304
    %v1306 = vpop.f32.mrf.mxu0
    %v1307 = vadd.f32 0.0, %v1306
    %v1308 = vpop.f32.mrf.mxu0
    %v1309 = vadd.f32 0.0, %v1308
    %v1310 = vpop.f32.mrf.mxu0
    %v1311 = vadd.f32 0.0, %v1310
    %1312 = vmatprep.mubr.bf16.mxu0 %v293
    %1313 = vmatmul.mubr.bf16.gmra.mxu0 %v292
    %v1314 = vpop.f32.mrf.mxu0
    %v1315 = vadd.f32 0.0, %v1314
    %v1316 = vpop.f32.mrf.mxu0
    %v1317 = vadd.f32 0.0, %v1316
    %v1318 = vpop.f32.mrf.mxu0
    %v1319 = vadd.f32 0.0, %v1318
    %v1320 = vpop.f32.mrf.mxu0
    %v1321 = vadd.f32 0.0, %v1320
    %1322 = vdwg.mxu0
    %1323 = vmatprep.subr.bf16.mxu0 %v979
    %1324 = vmatpush1.bf16.msra.mxu0 %v978
    %1325 = vmatprep.subr.bf16.mxu0 %v975
    %1326 = vmatpush1.bf16.msra.mxu0 %v974
    %1327 = vmatprep.subr.bf16.mxu0 %v971
    %1328 = vmatpush1.bf16.msra.mxu0 %v970
    %1329 = vmatprep.subr.bf16.mxu0 %v967
    %1330 = vmatpush1.bf16.msra.mxu0 %v966
    %1331 = vmatprep.subr.bf16.mxu0 %v963
    %1332 = vmatpush1.bf16.msra.mxu0 %v962
    %1333 = vmatprep.subr.bf16.mxu0 %v959
    %1334 = vmatpush1.bf16.msra.mxu0 %v958
    %1335 = vmatprep.subr.bf16.mxu0 %v955
    %1336 = vmatpush1.bf16.msra.mxu0 %v954
    %1337 = vmatprep.subr.bf16.mxu0 %v951
    %1338 = vmatpush1.bf16.msra.mxu0 %v950
    %1339 = vmatprep.subr.bf16.mxu0 %v1011
    %1340 = vmatpush2.bf16.msra.mxu0 %v1010
    %1341 = vmatprep.subr.bf16.mxu0 %v1007
    %1342 = vmatpush2.bf16.msra.mxu0 %v1006
    %1343 = vmatprep.subr.bf16.mxu0 %v1003
    %1344 = vmatpush2.bf16.msra.mxu0 %v1002
    %1345 = vmatprep.subr.bf16.mxu0 %v999
    %1346 = vmatpush2.bf16.msra.mxu0 %v998
    %1347 = vmatprep.subr.bf16.mxu0 %v995
    %1348 = vmatpush2.bf16.msra.mxu0 %v994
    %1349 = vmatprep.subr.bf16.mxu0 %v991
    %1350 = vmatpush2.bf16.msra.mxu0 %v990
    %1351 = vmatprep.subr.bf16.mxu0 %v987
    %1352 = vmatpush2.bf16.msra.mxu0 %v986
    %1353 = vmatprep.subr.bf16.mxu0 %v983
    %1354 = vmatpush2.bf16.msra.mxu0 %v982
    %1355 = vmatprep.mubr.bf16.mxu0 %v289
    %1356 = vmatmul.mubr.bf16.gmra.mxu0 %v288
    %v1357 = vpop.f32.mrf.mxu0
    %v1358 = vadd.f32 %v1305, %v1357
    %v1359 = vpop.f32.mrf.mxu0
    %v1360 = vadd.f32 %v1307, %v1359
    %v1361 = vpop.f32.mrf.mxu0
    %v1362 = vadd.f32 %v1309, %v1361
    %v1363 = vpop.f32.mrf.mxu0
    %v1364 = vadd.f32 %v1311, %v1363
    %1365 = vmatprep.mubr.bf16.mxu0 %v295
    %1366 = vmatmul.mubr.bf16.gmra.mxu0 %v294
    %v1367 = vpop.f32.mrf.mxu0
    %v1368 = vadd.f32 %v1315, %v1367
    %v1369 = vpop.f32.mrf.mxu0
    %v1370 = vadd.f32 %v1317, %v1369
    %v1371 = vpop.f32.mrf.mxu0
    %v1372 = vadd.f32 %v1319, %v1371
    %v1373 = vpop.f32.mrf.mxu0
    %v1374 = vadd.f32 %v1321, %v1373
    %1375 = vdwg.mxu0
    %1376 = vmatprep.subr.bf16.mxu0 %v1043
    %1377 = vmatpush1.bf16.msra.mxu0 %v1042
    %1378 = vmatprep.subr.bf16.mxu0 %v1039
    %1379 = vmatpush1.bf16.msra.mxu0 %v1038
    %1380 = vmatprep.subr.bf16.mxu0 %v1035
    %1381 = vmatpush1.bf16.msra.mxu0 %v1034
    %1382 = vmatprep.subr.bf16.mxu0 %v1031
    %1383 = vmatpush1.bf16.msra.mxu0 %v1030
    %1384 = vmatprep.subr.bf16.mxu0 %v1027
    %1385 = vmatpush1.bf16.msra.mxu0 %v1026
    %1386 = vmatprep.subr.bf16.mxu0 %v1023
    %1387 = vmatpush1.bf16.msra.mxu0 %v1022
    %1388 = vmatprep.subr.bf16.mxu0 %v1019
    %1389 = vmatpush1.bf16.msra.mxu0 %v1018
    %1390 = vmatprep.subr.bf16.mxu0 %v1015
    %1391 = vmatpush1.bf16.msra.mxu0 %v1014
    %1392 = vmatprep.subr.bf16.mxu0 %v1075
    %1393 = vmatpush2.bf16.msra.mxu0 %v1074
    %1394 = vmatprep.subr.bf16.mxu0 %v1071
    %1395 = vmatpush2.bf16.msra.mxu0 %v1070
    %1396 = vmatprep.subr.bf16.mxu0 %v1067
    %1397 = vmatpush2.bf16.msra.mxu0 %v1066
    %1398 = vmatprep.subr.bf16.mxu0 %v1063
    %1399 = vmatpush2.bf16.msra.mxu0 %v1062
    %1400 = vmatprep.subr.bf16.mxu0 %v1059
    %1401 = vmatpush2.bf16.msra.mxu0 %v1058
    %1402 = vmatprep.subr.bf16.mxu0 %v1055
    %1403 = vmatpush2.bf16.msra.mxu0 %v1054
    %1404 = vmatprep.subr.bf16.mxu0 %v1051
    %1405 = vmatpush2.bf16.msra.mxu0 %v1050
    %1406 = vmatprep.subr.bf16.mxu0 %v1047
    %1407 = vmatpush2.bf16.msra.mxu0 %v1046
    %1408 = vmatprep.mubr.bf16.mxu0 %v291
    %1409 = vmatmul.mubr.bf16.gmra.mxu0 %v290
    %v1410 = vpop.f32.mrf.mxu0
    %v1411 = vadd.f32 %v1358, %v1410
    %v1412 = vpop.f32.mrf.mxu0
    %v1413 = vadd.f32 %v1360, %v1412
    %v1414 = vpop.f32.mrf.mxu0
    %v1415 = vadd.f32 %v1362, %v1414
    %v1416 = vpop.f32.mrf.mxu0
    %v1417 = vadd.f32 %v1364, %v1416
    %1418 = vmatprep.mubr.bf16.mxu0 %v297
    %1419 = vmatmul.mubr.bf16.gmra.mxu0 %v296
    %v1420 = vpop.f32.mrf.mxu0
    %v1421 = vadd.f32 %v1368, %v1420
    %v1422 = vpop.f32.mrf.mxu0
    %v1423 = vadd.f32 %v1370, %v1422
    %v1424 = vpop.f32.mrf.mxu0
    %v1425 = vadd.f32 %v1372, %v1424
    %v1426 = vpop.f32.mrf.mxu0
    %v1427 = vadd.f32 %v1374, %v1426
    %1428 = vdwg.mxu0
    %1429 = vmatprep.subr.bf16.mxu0 %v917
    %1430 = vmatpush1.bf16.msra.mxu0 %v916
    %1431 = vmatprep.subr.bf16.mxu0 %v913
    %1432 = vmatpush1.bf16.msra.mxu0 %v912
    %1433 = vmatprep.subr.bf16.mxu0 %v909
    %1434 = vmatpush1.bf16.msra.mxu0 %v908
    %1435 = vmatprep.subr.bf16.mxu0 %v905
    %1436 = vmatpush1.bf16.msra.mxu0 %v904
    %1437 = vmatprep.subr.bf16.mxu0 %v901
    %1438 = vmatpush1.bf16.msra.mxu0 %v900
    %1439 = vmatprep.subr.bf16.mxu0 %v897
    %1440 = vmatpush1.bf16.msra.mxu0 %v896
    %1441 = vmatprep.subr.bf16.mxu0 %v893
    %1442 = vmatpush1.bf16.msra.mxu0 %v892
    %1443 = vmatprep.subr.bf16.mxu0 %v889
    %1444 = vmatpush1.bf16.msra.mxu0 %v888
    %1445 = vmatprep.subr.bf16.mxu0 %v949
    %1446 = vmatpush2.bf16.msra.mxu0 %v948
    %1447 = vmatprep.subr.bf16.mxu0 %v945
    %1448 = vmatpush2.bf16.msra.mxu0 %v944
    %1449 = vmatprep.subr.bf16.mxu0 %v941
    %1450 = vmatpush2.bf16.msra.mxu0 %v940
    %1451 = vmatprep.subr.bf16.mxu0 %v937
    %1452 = vmatpush2.bf16.msra.mxu0 %v936
    %1453 = vmatprep.subr.bf16.mxu0 %v933
    %1454 = vmatpush2.bf16.msra.mxu0 %v932
    %1455 = vmatprep.subr.bf16.mxu0 %v929
    %1456 = vmatpush2.bf16.msra.mxu0 %v928
    %1457 = vmatprep.subr.bf16.mxu0 %v925
    %1458 = vmatpush2.bf16.msra.mxu0 %v924
    %1459 = vmatprep.subr.bf16.mxu0 %v921
    %1460 = vmatpush2.bf16.msra.mxu0 %v920
    %1461 = vmatprep.mubr.bf16.mxu0 %v287
    %1462 = vmatmul.mubr.bf16.gmra.mxu0 %v286
    %v1463 = vpop.f32.mrf.mxu0
    %v1464 = vadd.f32 0.0, %v1463
    %v1465 = vpop.f32.mrf.mxu0
    %v1466 = vadd.f32 0.0, %v1465
    %v1467 = vpop.f32.mrf.mxu0
    %v1468 = vadd.f32 0.0, %v1467
    %v1469 = vpop.f32.mrf.mxu0
    %v1470 = vadd.f32 0.0, %v1469
    %1471 = vmatprep.mubr.bf16.mxu0 %v293
    %1472 = vmatmul.mubr.bf16.gmra.mxu0 %v292
    %v1473 = vpop.f32.mrf.mxu0
    %v1474 = vadd.f32 0.0, %v1473
    %v1475 = vpop.f32.mrf.mxu0
    %v1476 = vadd.f32 0.0, %v1475
    %v1477 = vpop.f32.mrf.mxu0
    %v1478 = vadd.f32 0.0, %v1477
    %v1479 = vpop.f32.mrf.mxu0
    %v1480 = vadd.f32 0.0, %v1479
    %1481 = vdwg.mxu0
    %1482 = vmatprep.subr.bf16.mxu0 %v981
    %1483 = vmatpush1.bf16.msra.mxu0 %v980
    %1484 = vmatprep.subr.bf16.mxu0 %v977
    %1485 = vmatpush1.bf16.msra.mxu0 %v976
    %1486 = vmatprep.subr.bf16.mxu0 %v973
    %1487 = vmatpush1.bf16.msra.mxu0 %v972
    %1488 = vmatprep.subr.bf16.mxu0 %v969
    %1489 = vmatpush1.bf16.msra.mxu0 %v968
    %1490 = vmatprep.subr.bf16.mxu0 %v965
    %1491 = vmatpush1.bf16.msra.mxu0 %v964
    %1492 = vmatprep.subr.bf16.mxu0 %v961
    %1493 = vmatpush1.bf16.msra.mxu0 %v960
    %1494 = vmatprep.subr.bf16.mxu0 %v957
    %1495 = vmatpush1.bf16.msra.mxu0 %v956
    %1496 = vmatprep.subr.bf16.mxu0 %v953
    %1497 = vmatpush1.bf16.msra.mxu0 %v952
    %1498 = vmatprep.subr.bf16.mxu0 %v1013
    %1499 = vmatpush2.bf16.msra.mxu0 %v1012
    %1500 = vmatprep.subr.bf16.mxu0 %v1009
    %1501 = vmatpush2.bf16.msra.mxu0 %v1008
    %1502 = vmatprep.subr.bf16.mxu0 %v1005
    %1503 = vmatpush2.bf16.msra.mxu0 %v1004
    %1504 = vmatprep.subr.bf16.mxu0 %v1001
    %1505 = vmatpush2.bf16.msra.mxu0 %v1000
    %1506 = vmatprep.subr.bf16.mxu0 %v997
    %1507 = vmatpush2.bf16.msra.mxu0 %v996
    %1508 = vmatprep.subr.bf16.mxu0 %v993
    %1509 = vmatpush2.bf16.msra.mxu0 %v992
    %1510 = vmatprep.subr.bf16.mxu0 %v989
    %1511 = vmatpush2.bf16.msra.mxu0 %v988
    %1512 = vmatprep.subr.bf16.mxu0 %v985
    %1513 = vmatpush2.bf16.msra.mxu0 %v984
    %1514 = vmatprep.mubr.bf16.mxu0 %v289
    %1515 = vmatmul.mubr.bf16.gmra.mxu0 %v288
    %v1516 = vpop.f32.mrf.mxu0
    %v1517 = vadd.f32 %v1464, %v1516
    %v1518 = vpop.f32.mrf.mxu0
    %v1519 = vadd.f32 %v1466, %v1518
    %v1520 = vpop.f32.mrf.mxu0
    %v1521 = vadd.f32 %v1468, %v1520
    %v1522 = vpop.f32.mrf.mxu0
    %v1523 = vadd.f32 %v1470, %v1522
    %1524 = vmatprep.mubr.bf16.mxu0 %v295
    %1525 = vmatmul.mubr.bf16.gmra.mxu0 %v294
    %v1526 = vpop.f32.mrf.mxu0
    %v1527 = vadd.f32 %v1474, %v1526
    %v1528 = vpop.f32.mrf.mxu0
    %v1529 = vadd.f32 %v1476, %v1528
    %v1530 = vpop.f32.mrf.mxu0
    %v1531 = vadd.f32 %v1478, %v1530
    %v1532 = vpop.f32.mrf.mxu0
    %v1533 = vadd.f32 %v1480, %v1532
    %1534 = vdwg.mxu0
    %1535 = vmatprep.subr.bf16.mxu0 %v1045
    %1536 = vmatpush1.bf16.msra.mxu0 %v1044
    %1537 = vmatprep.subr.bf16.mxu0 %v1041
    %1538 = vmatpush1.bf16.msra.mxu0 %v1040
    %1539 = vmatprep.subr.bf16.mxu0 %v1037
    %1540 = vmatpush1.bf16.msra.mxu0 %v1036
    %1541 = vmatprep.subr.bf16.mxu0 %v1033
    %1542 = vmatpush1.bf16.msra.mxu0 %v1032
    %1543 = vmatprep.subr.bf16.mxu0 %v1029
    %1544 = vmatpush1.bf16.msra.mxu0 %v1028
    %1545 = vmatprep.subr.bf16.mxu0 %v1025
    %1546 = vmatpush1.bf16.msra.mxu0 %v1024
    %1547 = vmatprep.subr.bf16.mxu0 %v1021
    %1548 = vmatpush1.bf16.msra.mxu0 %v1020
    %1549 = vmatprep.subr.bf16.mxu0 %v1017
    %1550 = vmatpush1.bf16.msra.mxu0 %v1016
    %1551 = vmatprep.subr.bf16.mxu0 %v1077
    %1552 = vmatpush2.bf16.msra.mxu0 %v1076
    %1553 = vmatprep.subr.bf16.mxu0 %v1073
    %1554 = vmatpush2.bf16.msra.mxu0 %v1072
    %1555 = vmatprep.subr.bf16.mxu0 %v1069
    %1556 = vmatpush2.bf16.msra.mxu0 %v1068
    %1557 = vmatprep.subr.bf16.mxu0 %v1065
    %1558 = vmatpush2.bf16.msra.mxu0 %v1064
    %1559 = vmatprep.subr.bf16.mxu0 %v1061
    %1560 = vmatpush2.bf16.msra.mxu0 %v1060
    %1561 = vmatprep.subr.bf16.mxu0 %v1057
    %1562 = vmatpush2.bf16.msra.mxu0 %v1056
    %1563 = vmatprep.subr.bf16.mxu0 %v1053
    %1564 = vmatpush2.bf16.msra.mxu0 %v1052
    %1565 = vmatprep.subr.bf16.mxu0 %v1049
    %1566 = vmatpush2.bf16.msra.mxu0 %v1048
    %1567 = vmatprep.mubr.bf16.mxu0 %v291
    %1568 = vmatmul.mubr.bf16.gmra.mxu0 %v290
    %v1569 = vpop.f32.mrf.mxu0
    %v1570 = vadd.f32 %v1517, %v1569
    %v1571 = vpop.f32.mrf.mxu0
    %v1572 = vadd.f32 %v1519, %v1571
    %v1573 = vpop.f32.mrf.mxu0
    %v1574 = vadd.f32 %v1521, %v1573
    %v1575 = vpop.f32.mrf.mxu0
    %v1576 = vadd.f32 %v1523, %v1575
    %1577 = vmatprep.mubr.bf16.mxu0 %v297
    %1578 = vmatmul.mubr.bf16.gmra.mxu0 %v296
    %v1579 = vpop.f32.mrf.mxu0
    %v1580 = vadd.f32 %v1527, %v1579
    %v1581 = vpop.f32.mrf.mxu0
    %v1582 = vadd.f32 %v1529, %v1581
    %v1583 = vpop.f32.mrf.mxu0
    %v1584 = vadd.f32 %v1531, %v1583
    %v1585 = vpop.f32.mrf.mxu0
    %v1586 = vadd.f32 %v1533, %v1585
    %1587 = vdwg.mxu0
    %v1588 = vadd.f32 %v1411, %v1413
    %v1589 = vadd.f32 %v1588, %v1570
    %v1590 = vadd.f32 %v1589, %v1572
    %1591 = vadd.xlane.f32.xlu0 %v1590
    %v1592 = vpop.xlane.xlu0 %1591
    %v1593 = vadd.f32 %v1415, %v1417
    %v1594 = vadd.f32 %v1593, %v1574
    %v1595 = vadd.f32 %v1594, %v1576
    %1596 = vadd.xlane.f32.xlu0 %v1595
    %v1597 = vpop.xlane.xlu0 %1596
    %v1598 = vadd.f32 %v1421, %v1423
    %v1599 = vadd.f32 %v1598, %v1580
    %v1600 = vadd.f32 %v1599, %v1582
    %1601 = vadd.xlane.f32.xlu0 %v1600
    %v1602 = vpop.xlane.xlu0 %1601
    %v1603 = vadd.f32 %v1425, %v1427
    %v1604 = vadd.f32 %v1603, %v1584
    %v1605 = vadd.f32 %v1604, %v1586
    %1606 = vadd.xlane.f32.xlu0 %v1605
    %v1607 = vpop.xlane.xlu0 %1606
    %v1608 = vmul.f32 %v1592, 0.001953125
    %v1609 = vmul.f32 %v1597, 0.001953125
    %v1610 = vmul.f32 %v1602, 0.001953125
    %v1611 = vmul.f32 %v1607, 0.001953125
    %v1612 = vmul.f32 %v1411, %v1411
    %v1613 = vmul.f32 %v1413, %v1413
    %v1614 = vmul.f32 %v1570, %v1570
    %v1615 = vmul.f32 %v1572, %v1572
    %v1616 = vmul.f32 %v1415, %v1415
    %v1617 = vmul.f32 %v1417, %v1417
    %v1618 = vmul.f32 %v1574, %v1574
    %v1619 = vmul.f32 %v1576, %v1576
    %v1620 = vmul.f32 %v1421, %v1421
    %v1621 = vmul.f32 %v1423, %v1423
    %v1622 = vmul.f32 %v1580, %v1580
    %v1623 = vmul.f32 %v1582, %v1582
    %v1624 = vmul.f32 %v1425, %v1425
    %v1625 = vmul.f32 %v1427, %v1427
    %v1626 = vmul.f32 %v1584, %v1584
    %v1627 = vmul.f32 %v1586, %v1586
    %v1628 = vadd.f32 %v1612, %v1613
    %v1629 = vadd.f32 %v1628, %v1614
    %v1630 = vadd.f32 %v1629, %v1615
    %1631 = vadd.xlane.f32.xlu0 %v1630
    %v1632 = vpop.xlane.xlu0 %1631
    %v1633 = vadd.f32 %v1616, %v1617
    %v1634 = vadd.f32 %v1633, %v1618
    %v1635 = vadd.f32 %v1634, %v1619
    %1636 = vadd.xlane.f32.xlu0 %v1635
    %v1637 = vpop.xlane.xlu0 %1636
    %v1638 = vadd.f32 %v1620, %v1621
    %v1639 = vadd.f32 %v1638, %v1622
    %v1640 = vadd.f32 %v1639, %v1623
    %1641 = vadd.xlane.f32.xlu0 %v1640
    %v1642 = vpop.xlane.xlu0 %1641
    %v1643 = vadd.f32 %v1624, %v1625
    %v1644 = vadd.f32 %v1643, %v1626
    %v1645 = vadd.f32 %v1644, %v1627
    %1646 = vadd.xlane.f32.xlu0 %v1645
    %v1647 = vpop.xlane.xlu0 %1646
    %v1648 = vmul.f32 %v1632, 0.001953125
    %v1649 = vmul.f32 %v1637, 0.001953125
    %v1650 = vmul.f32 %v1642, 0.001953125
    %v1651 = vmul.f32 %v1647, 0.001953125
    %v1652 = vmul.f32 %v1608, %v1608
    %v1653 = vmul.f32 %v1609, %v1609
    %v1654 = vmul.f32 %v1610, %v1610
    %v1655 = vmul.f32 %v1611, %v1611
    %v1656 = vsub.f32 %v1648, %v1652
    %v1657 = vsub.f32 %v1649, %v1653
    %v1658 = vsub.f32 %v1650, %v1654
    %v1659 = vsub.f32 %v1651, %v1655
    %v1660 = vld [vmem:[%s2] sm:$0xff]
    %v1661 = vld [vmem:[%s2 + $0x8] sm:$0xff]
    %v1662 = vld [vmem:[%s2 + $0x10] sm:$0xff]
    %v1663 = vld [vmem:[%s2 + $0x18] sm:$0xff]
    %v1664 = vadd.f32 %v1656, 1e-05
    %v1665 = vadd.f32 %v1657, 1e-05
    %v1666 = vadd.f32 %v1658, 1e-05
    %v1667 = vadd.f32 %v1659, 1e-05
    %v1668 = vrsqrt.pop %v1664
    %v1669 = vrsqrt.pop %v1665
    %v1670 = vrsqrt.pop %v1666
    %v1671 = vrsqrt.pop %v1667
    %v1672 = vmul.f32 %v1660, %v1668
    %v1673 = vmul.f32 %v1661, %v1669
    %v1674 = vmul.f32 %v1662, %v1670
    %v1675 = vmul.f32 %v1663, %v1671
    %v1676 = vld [vmem:[%s3] sm:$0xff]
    %v1677 = vld [vmem:[%s3 + $0x8] sm:$0xff]
    %v1678 = vld [vmem:[%s3 + $0x10] sm:$0xff]
    %v1679 = vld [vmem:[%s3 + $0x18] sm:$0xff]
    %v1680 = vmul.f32 %v1608, %v1672
    %v1681 = vmul.f32 %v1609, %v1673
    %v1682 = vmul.f32 %v1610, %v1674
    %v1683 = vmul.f32 %v1611, %v1675
    %v1684 = vsub.f32 %v1676, %v1680
    %v1685 = vsub.f32 %v1677, %v1681
    %v1686 = vsub.f32 %v1678, %v1682
    %v1687 = vsub.f32 %v1679, %v1683
    %1689 = vset.pattern.permute.xlu0 0
    %1690 = vperm.xlu0 %1689, %v1672
    %v1691 = vpop.permute.xlu0 %1690
    %1694 = vset.pattern.permute.xlu0 0
    %1695 = vperm.xlu0 %1694, %v1673
    %v1696 = vpop.permute.xlu0 %1695
    %1699 = vset.pattern.permute.xlu0 0
    %1700 = vperm.xlu0 %1699, %v1674
    %v1701 = vpop.permute.xlu0 %1700
    %1704 = vset.pattern.permute.xlu0 0
    %1705 = vperm.xlu0 %1704, %v1675
    %v1706 = vpop.permute.xlu0 %1705
    %v1708 = vmul.f32 %v1411, %v1691
    %v1709 = vmul.f32 %v1413, %v1691
    %v1710 = vmul.f32 %v1570, %v1691
    %v1711 = vmul.f32 %v1572, %v1691
    %v1712 = vmul.f32 %v1415, %v1696
    %v1713 = vmul.f32 %v1417, %v1696
    %v1714 = vmul.f32 %v1574, %v1696
    %v1715 = vmul.f32 %v1576, %v1696
    %v1716 = vmul.f32 %v1421, %v1701
    %v1717 = vmul.f32 %v1423, %v1701
    %v1718 = vmul.f32 %v1580, %v1701
    %v1719 = vmul.f32 %v1582, %v1701
    %v1720 = vmul.f32 %v1425, %v1706
    %v1721 = vmul.f32 %v1427, %v1706
    %v1722 = vmul.f32 %v1584, %v1706
    %v1723 = vmul.f32 %v1586, %v1706
    %1725 = vset.pattern.permute.xlu0 0
    %1726 = vperm.xlu0 %1725, %v1684
    %v1727 = vpop.permute.xlu0 %1726
    %1730 = vset.pattern.permute.xlu0 0
    %1731 = vperm.xlu0 %1730, %v1685
    %v1732 = vpop.permute.xlu0 %1731
    %1735 = vset.pattern.permute.xlu0 0
    %1736 = vperm.xlu0 %1735, %v1686
    %v1737 = vpop.permute.xlu0 %1736
    %1740 = vset.pattern.permute.xlu0 0
    %1741 = vperm.xlu0 %1740, %v1687
    %v1742 = vpop.permute.xlu0 %1741
    %v1744 = vadd.f32 %v1708, %v1727
    %v1745 = vadd.f32 %v1709, %v1727
    %v1746 = vadd.f32 %v1710, %v1727
    %v1747 = vadd.f32 %v1711, %v1727
    %v1748 = vadd.f32 %v1712, %v1732
    %v1749 = vadd.f32 %v1713, %v1732
    %v1750 = vadd.f32 %v1714, %v1732
    %v1751 = vadd.f32 %v1715, %v1732
    %v1752 = vadd.f32 %v1716, %v1737
    %v1753 = vadd.f32 %v1717, %v1737
    %v1754 = vadd.f32 %v1718, %v1737
    %v1755 = vadd.f32 %v1719, %v1737
    %v1756 = vadd.f32 %v1720, %v1742
    %v1757 = vadd.f32 %v1721, %v1742
    %v1758 = vadd.f32 %v1722, %v1742
    %v1759 = vadd.f32 %v1723, %v1742
    %v1760 = vmax.f32 %v1744, 0.0
    %v1761 = vmax.f32 %v1745, 0.0
    %v1762 = vmax.f32 %v1746, 0.0
    %v1763 = vmax.f32 %v1747, 0.0
    %v1764 = vmax.f32 %v1748, 0.0
    %v1765 = vmax.f32 %v1749, 0.0
    %v1766 = vmax.f32 %v1750, 0.0
    %v1767 = vmax.f32 %v1751, 0.0
    %v1768 = vmax.f32 %v1752, 0.0
    %v1769 = vmax.f32 %v1753, 0.0
    %v1770 = vmax.f32 %v1754, 0.0
    %v1771 = vmax.f32 %v1755, 0.0
    %v1772 = vmax.f32 %v1756, 0.0
    %v1773 = vmax.f32 %v1757, 0.0
    %v1774 = vmax.f32 %v1758, 0.0
    %v1775 = vmax.f32 %v1759, 0.0
    %1776 = vst [vmem:[#allocation7] sm:$0xff] %v1760
    %1777 = vst [vmem:[#allocation7 + $0x8] sm:$0xff] %v1761
    %1778 = vst [vmem:[#allocation7 + $0x10] sm:$0xff] %v1762
    %1779 = vst [vmem:[#allocation7 + $0x18] sm:$0xff] %v1763
    %1780 = vst [vmem:[#allocation7 + $0x20] sm:$0xff] %v1764
    %1781 = vst [vmem:[#allocation7 + $0x28] sm:$0xff] %v1765
    %1782 = vst [vmem:[#allocation7 + $0x30] sm:$0xff] %v1766
    %1783 = vst [vmem:[#allocation7 + $0x38] sm:$0xff] %v1767
    %1784 = vst [vmem:[#allocation7 + $0x40] sm:$0xff] %v1768
    %1785 = vst [vmem:[#allocation7 + $0x48] sm:$0xff] %v1769
    %1786 = vst [vmem:[#allocation7 + $0x50] sm:$0xff] %v1770
    %1787 = vst [vmem:[#allocation7 + $0x58] sm:$0xff] %v1771
    %1788 = vst [vmem:[#allocation7 + $0x60] sm:$0xff] %v1772
    %1789 = vst [vmem:[#allocation7 + $0x68] sm:$0xff] %v1773
    %1790 = vst [vmem:[#allocation7 + $0x70] sm:$0xff] %v1774
    %1791 = vst [vmem:[#allocation7 + $0x78] sm:$0xff] %v1775
    // Predicated region
    $region26: #{tpu_custom_call.1} parent=1 // pred_check
      _
    $region27: #{tpu_custom_call.1} parent=1 // pred_check_branch
      %1793 = sbr.rel (0) target = $region29
    $region28: #{tpu_custom_call.1} parent=1 // pred_region
      %s1795 = ssub.s32 2048, 2048
      %1796 = vsyncadd [#allocation4], %s1795
      %s1797 = sshll.u32 [#allocation7], 4
      %s1798 = int_to_ptr.vmem [resolvable:$true] %s1797
      %1803 = dma.vmem_to_hbm [thread:$0]  %s1798, 2048, %s4, [#allocation4], 512, 512, 32
    $region29: #{tpu_custom_call.1} parent=1 // pred_fallthru
      _
    // Predicated region
    $region30: #{tpu_custom_call.1} parent=1 // pred_check
      _
    $region31: #{tpu_custom_call.1} parent=1 // pred_check_branch
      %1805 = sbr.rel (0) target = $region33
    $region32: #{tpu_custom_call.1} parent=1 // pred_region
      %1806 = dma.done [#allocation4], 2048
    $region33: #{tpu_custom_call.1} parent=1 // pred_fallthru
      _
    %1807 = vsyncpa [#allocation3], 1
    %1808 = vsyncpa [#allocation6], 1
    %1809 = vsyncpa [#allocation4], 1

</llo_original>
